<compile_context>
chip_gen: v5e
topology: v5e:2x2
jax: 0.10.0
libtpu: 0.0.40
codegen_flags: <defaults>
</compile_context>

<pallas_src>
import functools
import math

import jax
import jax.numpy as jnp
from jax.experimental import pallas as pl
from jax.experimental.pallas import tpu as pltpu

LN_EPS = 1e-5        # torch.nn.LayerNorm default
RESCALE_EPS = 1e-8   # rescale_magnitude_rotating_features eps


def rotating_linear_kernel(n, x_ref, w_ref, rb_ref, gamma_ref, beta_ref, o_ref):
    # x_ref:     (tb*n, c_in)   native dtype (2D MXU LHS, lane-dense loads)
    # w_ref:     (c_in, c_out)  native dtype (grid-invariant, DMA'd once)
    # rb_ref:    (n, c_out)     f32
    # gamma_ref: (1, c_out)     f32
    # beta_ref:  (1, c_out)     f32
    # o_ref:     (tb*n, c_out)  2D sublane/lane-dense output store
    rows, c_in = x_ref.shape
    tb = rows // n
    c_out = w_ref.shape[1]

    x2 = x_ref[...]                                   # (tb*n, c_in)  native dtype
    w = w_ref[...]                                    # (c_in, c_out) native dtype

    # psi: one tall MXU pass directly on the 2D input block (no LHS copy).
    # TODO(synk): for production bf16 throughput, cast f32 operands to bf16
    # here (keep f32 accumulation + epilogue); the demo's 1e-5 assert forbids it.
    psi = jnp.dot(x2, w, preferred_element_type=jnp.float32)        # (tb*n, c_out) f32
    psi = psi.reshape(tb, n, c_out)

    # ||x||_2 over the rotation axis (f32); chi reuses the same resident RHS
    # via a second small dot (replaces the old concatenate + single dot).
    x3 = x2.astype(jnp.float32).reshape(tb, n, c_in)
    mag_x = jnp.sqrt(jnp.sum(x3 * x3, axis=1))                       # (tb, c_in) f32
    # NOTE: the cast keeps the chi dot on the fast MXU path for bf16 weights;
    # for bf16 inputs it rounds ||x|| to bf16 (within matmul noise of the ref).
    chi = jnp.dot(mag_x.astype(w.dtype), w,
                  preferred_element_type=jnp.float32)                # (tb, c_out) f32

    # z = psi + rotation_bias (broadcast over batch).
    z = psi + rb_ref[...][None, :, :]                                # (tb, n, c_out)

    # magnitude = relu(LayerNorm(0.5 * ||psi|| + 0.5 * chi))
    mag_psi = jnp.sqrt(jnp.sum(psi * psi, axis=1))                   # (tb, c_out)
    m = 0.5 * mag_psi + 0.5 * chi
    mu = jnp.mean(m, axis=-1, keepdims=True)
    var = jnp.mean((m - mu) ** 2, axis=-1, keepdims=True)
    m = (m - mu) * jax.lax.rsqrt(var + LN_EPS)
    m = m * gamma_ref[...] + beta_ref[...]
    m = jnp.maximum(m, 0.0)

    # out = z / (||z|| + 1e-8) * magnitude.  One EUP rsqrt on the squared norm
    # (eps folded into the squared norm; O(1e-8) difference vs the reference),
    # then pure multiplies over n -- no per-element divides on the VPU.
    z_sq = jnp.sum(z * z, axis=1)                                    # (tb, c_out)
    inv = jax.lax.rsqrt(z_sq + RESCALE_EPS * RESCALE_EPS)
    scale = m * inv                                                  # (tb, c_out)
    out = z * scale[:, None, :]                                      # (tb, n, c_out)
    o_ref[...] = out.reshape(rows, c_out).astype(o_ref.dtype)


def _num_tensorcores():
    """2 on dual-TensorCore chips (v7x), else 1 (v5e / v6e)."""
    try:
        kind = jax.devices()[0].device_kind.lower()
        if "v7" in kind:
            return 2
    except Exception:
        pass
    return 1


def _vmem_capacity_bytes():
    try:
        return int(pltpu.get_tpu_info().vmem_capacity_bytes)
    except Exception:
        return 64 << 20   # conservative fallback: v7x per-TensorCore VMEM


def _pick_batch_tile(b, n, c_in, c_out, itemsize, num_cores, block_budget):
    """Largest tb dividing b whose double-buffered x/out blocks fit the VMEM
    budget.  On dual-TC chips (num_cores=2) also keep >= 2 grid steps so both
    TensorCores get work on the 'parallel' batch axis; on single-TC chips one
    big step wins (per-step overhead ~0.35 us; a bigger M amortizes the three
    cross-sublane reductions and the LayerNorm epilogue)."""
    best = 1
    for tb in range(1, b + 1):
        if b % tb:
            continue
        if num_cores > 1 and b >= num_cores and (b // tb) < num_cores:
            continue
        block_bytes = 2 * tb * n * (c_in + c_out) * itemsize  # double-buffered in+out
        if block_bytes > block_budget:
            continue
        best = tb
    return best


def rotating_linear(x, weight_t, rotation_bias, ln_gamma, ln_beta, *, block_b=None):
    """x: (b, n, c_in); weight_t: (c_in, c_out) -- pre-transposed ONCE at init,
    not per call; rotation_bias: (1, n, c_out); ln_gamma / ln_beta: (c_out,)."""
    b, n, c_in = x.shape
    c_out = weight_t.shape[1]
    assert weight_t.shape[0] == c_in

    elt = x.dtype.itemsize
    # Grid-invariant operands (constant index maps: DMA'd once by the pipeline,
    # but the default pipeline still allocates two buffers for each -- counted
    # conservatively here).  Once c_in*c_out dominates VMEM, single-buffer them
    # (pipeline_mode=pl.Buffered(1)) to halve the resident footprint.
    resident = 2 * (c_in * c_out * weight_t.dtype.itemsize + (n + 2) * c_out * 4)

    num_cores = _num_tensorcores()
    budget = int(0.75 * _vmem_capacity_bytes())

    if block_b is None:
        tb = _pick_batch_tile(b, n, c_in, c_out, elt, num_cores, budget - resident)
    else:
        tb = block_b
    assert b % tb == 0, "batch tile must divide batch"

    # TODO(synk): if c_in*c_out outgrows the VMEM budget (hits first on v7x's
    # 64 MiB), add a c_out grid axis with a two-pass LayerNorm (accumulate
    # sum/sumsq per c_out tile, normalize in a finalize step).

    rb = rotation_bias.reshape(n, c_out).astype(jnp.float32)
    gamma = ln_gamma.reshape(1, c_out).astype(jnp.float32)
    beta = ln_beta.reshape(1, c_out).astype(jnp.float32)

    # Flatten to 2D outside the kernel (free, contiguous): MXU LHS and the
    # output store stay plain 2D sublane/lane-dense slabs.
    x2 = x.reshape(b * n, c_in)

    per_step = 2 * tb * n * (c_in + c_out) * elt + resident
    vmem_limit = int(min(max(per_step + (4 << 20), 32 << 20), budget))

    kernel = functools.partial(rotating_linear_kernel, n)

    out2 = pl.pallas_call(
        kernel,
        out_shape=jax.ShapeDtypeStruct((b * n, c_out), x.dtype),
        grid_spec=pltpu.PrefetchScalarGridSpec(
            num_scalar_prefetch=0,
            grid=(b // tb,),
            in_specs=[
                pl.BlockSpec((tb * n, c_in), lambda i: (i, 0)),
                pl.BlockSpec((c_in, c_out), lambda i: (0, 0)),
                pl.BlockSpec((n, c_out), lambda i: (0, 0)),
                pl.BlockSpec((1, c_out), lambda i: (0, 0)),
                pl.BlockSpec((1, c_out), lambda i: (0, 0)),
            ],
            out_specs=pl.BlockSpec((tb * n, c_out), lambda i: (i, 0)),
        ),
        compiler_params=pltpu.CompilerParams(
            dimension_semantics=("parallel",),
            vmem_limit_bytes=vmem_limit,
        ),
    )(x2, weight_t, rb, gamma, beta)

    return out2.reshape(b, n, c_out)


def rotating_linear_reference(x, weight, rotation_bias, ln_gamma, ln_beta):
    """Pure-JAX reference mirroring the PyTorch module (weight in torch (out, in))."""
    psi = jnp.einsum("bnc,dc->bnd", x, weight)
    mag_psi = jnp.linalg.norm(psi, axis=1)
    z = psi + rotation_bias
    chi = jnp.einsum("bc,dc->bd", jnp.linalg.norm(x, axis=1), weight)
    m = 0.5 * mag_psi + 0.5 * chi
    mu = jnp.mean(m, axis=-1, keepdims=True)
    var = jnp.mean((m - mu) ** 2, axis=-1, keepdims=True)
    m = (m - mu) / jnp.sqrt(var + LN_EPS) * ln_gamma + ln_beta
    m = jax.nn.relu(m)
    z_mag = jnp.linalg.norm(z, axis=1)
    return z / (z_mag[:, None, :] + RESCALE_EPS) * m[:, None, :]


if __name__ == "__main__":
    # (b, n, c_in) -> (b, n, c_out); n = opt.model.rotation_dimensions.
    # c_out is a multiple of 128 so the output store path is lane-dense.
    b, n = 8, 8
    c_in, c_out = 32, 128

    key = jax.random.PRNGKey(0)
    kx, kw, kb = jax.random.split(key, 3)

    x = jax.random.normal(kx, (b, n, c_in), dtype=jnp.float32)

    # nn.Linear(in, out, bias=False): weight (out, in), ~U(-1/sqrt(fan_in), 1/sqrt(fan_in))
    bound = 1.0 / math.sqrt(c_in)
    weight = jax.random.uniform(kw, (c_out, c_in), jnp.float32, -bound, bound)
    # One-time init-time layout conversion to the kernel's (c_in, c_out) layout
    # (hoisted out of the forward hot path).
    weight_t = jnp.asarray(weight.T)

    # rotation_bias ~ U(-1/sqrt(fan_in), 1/sqrt(fan_in)), shape (1, n, c_out)
    rotation_bias = jax.random.uniform(kb, (1, n, c_out), jnp.float32, -bound, bound)

    # LayerNorm(out_features, elementwise_affine=True) init: gamma=1, beta=0
    ln_gamma = jnp.ones((c_out,), jnp.float32)
    ln_beta = jnp.zeros((c_out,), jnp.float32)

    out = rotating_linear(x, weight_t, rotation_bias, ln_gamma, ln_beta)
    out = jax.block_until_ready(out)

    ref = rotating_linear_reference(x, weight, rotation_bias, ln_gamma, ln_beta)
    assert out.shape == (b, n, c_out)
    assert jnp.allclose(out, ref, atol=1e-5, rtol=1e-5), "mismatch vs JAX reference"

    print("KERNEL_OK")
</pallas_src>

<mosaic_0001>
module attributes {stable_mosaic.version = 11 : i64} {
  func.func @rotating_linear_kernel(%arg0: i32, %arg1: memref<64x32xf32, #tpu.memory_space<vmem>>, %arg2: memref<32x128xf32, #tpu.memory_space<vmem>>, %arg3: memref<8x128xf32, #tpu.memory_space<vmem>>, %arg4: memref<1x128xf32, #tpu.memory_space<vmem>>, %arg5: memref<1x128xf32, #tpu.memory_space<vmem>>, %arg6: memref<64x128xf32, #tpu.memory_space<vmem>>) attributes {dimension_semantics = [#tpu.dimension_semantics<parallel>], iteration_bounds = array<i64: 1>, scalar_prefetch = 0 : i64, scratch_operands = 0 : i64, tpu.core_type = #tpu.core_type<tc>, window_params = [{transform_indices = @transform_0, window_bounds = array<i64: 64, 32>}, {pipeline_mode = #tpu.pipeline_mode<synchronous>, transform_indices = @transform_1, window_bounds = array<i64: 32, 128>}, {pipeline_mode = #tpu.pipeline_mode<synchronous>, transform_indices = @transform_2, window_bounds = array<i64: 8, 128>}, {pipeline_mode = #tpu.pipeline_mode<synchronous>, transform_indices = @transform_3, window_bounds = array<i64: 1, 128>}, {pipeline_mode = #tpu.pipeline_mode<synchronous>, transform_indices = @transform_4, window_bounds = array<i64: 1, 128>}, {transform_indices = @transform_5, window_bounds = array<i64: 64, 128>}]} {
    %c0 = arith.constant 0 : index
    %c0_0 = arith.constant 0 : index
    %0 = vector.load %arg1[%c0, %c0_0] : memref<64x32xf32, #tpu.memory_space<vmem>>, vector<64x32xf32>
    %c0_1 = arith.constant 0 : index
    %c0_2 = arith.constant 0 : index
    %1 = vector.load %arg2[%c0_1, %c0_2] : memref<32x128xf32, #tpu.memory_space<vmem>>, vector<32x128xf32>
    %cst = arith.constant dense<0.000000e+00> : vector<64x128xf32>
    %2 = tpu.matmul %0, %1, %cst {dimension_numbers = #tpu.dot_dimension_numbers<[1], [0], [0], [1], [0, 0, 1, 1], [], []>} : vector<64x32xf32>, vector<32x128xf32>, vector<64x128xf32> -> vector<64x128xf32>
    %3 = vector.shape_cast %2 : vector<64x128xf32> to vector<8x8x128xf32>
    %4 = vector.shape_cast %0 : vector<64x32xf32> to vector<8x8x32xf32>
    %5 = arith.mulf %4, %4 : vector<8x8x32xf32>
    %cst_3 = arith.constant dense<0.000000e+00> : vector<8x32xf32>
    %6 = vector.multi_reduction <add>, %5, %cst_3 [1] : vector<8x8x32xf32> to vector<8x32xf32>
    %7 = math.sqrt %6 : vector<8x32xf32>
    %cst_4 = arith.constant dense<0.000000e+00> : vector<8x128xf32>
    %8 = tpu.matmul %7, %1, %cst_4 {dimension_numbers = #tpu.dot_dimension_numbers<[1], [0], [0], [1], [0, 0, 1, 1], [], []>} : vector<8x32xf32>, vector<32x128xf32>, vector<8x128xf32> -> vector<8x128xf32>
    %c0_5 = arith.constant 0 : index
    %c0_6 = arith.constant 0 : index
    %9 = vector.load %arg3[%c0_5, %c0_6] : memref<8x128xf32, #tpu.memory_space<vmem>>, vector<8x128xf32>
    %10 = vector.shape_cast %9 : vector<8x128xf32> to vector<1x8x128xf32>
    %11 = vector.broadcast %10 : vector<1x8x128xf32> to vector<8x8x128xf32>
    %12 = arith.addf %3, %11 : vector<8x8x128xf32>
    %13 = arith.mulf %3, %3 : vector<8x8x128xf32>
    %cst_7 = arith.constant dense<0.000000e+00> : vector<8x128xf32>
    %14 = vector.multi_reduction <add>, %13, %cst_7 [1] : vector<8x8x128xf32> to vector<8x128xf32>
    %15 = math.sqrt %14 : vector<8x128xf32>
    %cst_8 = arith.constant 5.000000e-01 : f32
    %16 = vector.broadcast %cst_8 : f32 to vector<8x128xf32>
    %17 = arith.mulf %16, %15 : vector<8x128xf32>
    %cst_9 = arith.constant 5.000000e-01 : f32
    %18 = vector.broadcast %cst_9 : f32 to vector<8x128xf32>
    %19 = arith.mulf %18, %8 : vector<8x128xf32>
    %20 = arith.addf %17, %19 : vector<8x128xf32>
    %cst_10 = arith.constant dense<0.000000e+00> : vector<8xf32>
    %21 = vector.multi_reduction <add>, %20, %cst_10 [1] : vector<8x128xf32> to vector<8xf32>
    %22 = vector.shape_cast %21 : vector<8xf32> to vector<8x1xf32>
    %cst_11 = arith.constant 1.280000e+02 : f32
    %23 = vector.broadcast %cst_11 : f32 to vector<8x1xf32>
    %24 = arith.divf %22, %23 : vector<8x1xf32>
    %25 = vector.broadcast %24 : vector<8x1xf32> to vector<8x128xf32>
    %26 = arith.subf %20, %25 : vector<8x128xf32>
    %27 = arith.mulf %26, %26 : vector<8x128xf32>
    %cst_12 = arith.constant dense<0.000000e+00> : vector<8xf32>
    %28 = vector.multi_reduction <add>, %27, %cst_12 [1] : vector<8x128xf32> to vector<8xf32>
    %29 = vector.shape_cast %28 : vector<8xf32> to vector<8x1xf32>
    %cst_13 = arith.constant 1.280000e+02 : f32
    %30 = vector.broadcast %cst_13 : f32 to vector<8x1xf32>
    %31 = arith.divf %29, %30 : vector<8x1xf32>
    %32 = vector.broadcast %24 : vector<8x1xf32> to vector<8x128xf32>
    %33 = arith.subf %20, %32 : vector<8x128xf32>
    %cst_14 = arith.constant 9.99999974E-6 : f32
    %34 = vector.broadcast %cst_14 : f32 to vector<8x1xf32>
    %35 = arith.addf %31, %34 : vector<8x1xf32>
    %36 = math.rsqrt %35 : vector<8x1xf32>
    %37 = vector.broadcast %36 : vector<8x1xf32> to vector<8x128xf32>
    %38 = arith.mulf %33, %37 : vector<8x128xf32>
    %c0_15 = arith.constant 0 : index
    %c0_16 = arith.constant 0 : index
    %39 = vector.load %arg4[%c0_15, %c0_16] : memref<1x128xf32, #tpu.memory_space<vmem>>, vector<1x128xf32>
    %40 = vector.broadcast %39 : vector<1x128xf32> to vector<8x128xf32>
    %41 = arith.mulf %38, %40 : vector<8x128xf32>
    %c0_17 = arith.constant 0 : index
    %c0_18 = arith.constant 0 : index
    %42 = vector.load %arg5[%c0_17, %c0_18] : memref<1x128xf32, #tpu.memory_space<vmem>>, vector<1x128xf32>
    %43 = vector.broadcast %42 : vector<1x128xf32> to vector<8x128xf32>
    %44 = arith.addf %41, %43 : vector<8x128xf32>
    %cst_19 = arith.constant 0.000000e+00 : f32
    %45 = vector.broadcast %cst_19 : f32 to vector<8x128xf32>
    %46 = arith.maximumf %44, %45 : vector<8x128xf32>
    %47 = arith.mulf %12, %12 : vector<8x8x128xf32>
    %cst_20 = arith.constant dense<0.000000e+00> : vector<8x128xf32>
    %48 = vector.multi_reduction <add>, %47, %cst_20 [1] : vector<8x8x128xf32> to vector<8x128xf32>
    %cst_21 = arith.constant 1.000000e-16 : f32
    %49 = vector.broadcast %cst_21 : f32 to vector<8x128xf32>
    %50 = arith.addf %48, %49 : vector<8x128xf32>
    %51 = math.rsqrt %50 : vector<8x128xf32>
    %52 = arith.mulf %46, %51 : vector<8x128xf32>
    %53 = vector.shape_cast %52 : vector<8x128xf32> to vector<8x1x128xf32>
    %54 = vector.broadcast %53 : vector<8x1x128xf32> to vector<8x8x128xf32>
    %55 = arith.mulf %12, %54 : vector<8x8x128xf32>
    %56 = vector.shape_cast %55 : vector<8x8x128xf32> to vector<64x128xf32>
    %c0_22 = arith.constant 0 : index
    %c0_23 = arith.constant 0 : index
    %57 = vector.load %arg6[%c0_22, %c0_23] : memref<64x128xf32, #tpu.memory_space<vmem>>, vector<64x128xf32>
    tpu.vector_store %arg6[%c0_22, %c0_23], %56 {strides = array<i32>} : memref<64x128xf32, #tpu.memory_space<vmem>>, vector<64x128xf32>,
    return
  }
  func.func @transform_0(%arg0: i32) -> (i32, i32) {
    %c0_i32 = arith.constant 0 : i32
    %c0_i32_0 = arith.constant 0 : i32
    return %arg0, %c0_i32 : i32, i32
  }
  func.func @transform_1(%arg0: i32) -> (i32, i32) {
    %c0_i32 = arith.constant 0 : i32
    %c0_i32_0 = arith.constant 0 : i32
    %c0_i32_1 = arith.constant 0 : i32
    return %c0_i32, %c0_i32_0 : i32, i32
  }
  func.func @transform_2(%arg0: i32) -> (i32, i32) {
    %c0_i32 = arith.constant 0 : i32
    %c0_i32_0 = arith.constant 0 : i32
    %c0_i32_1 = arith.constant 0 : i32
    return %c0_i32, %c0_i32_0 : i32, i32
  }
  func.func @transform_3(%arg0: i32) -> (i32, i32) {
    %c0_i32 = arith.constant 0 : i32
    %c0_i32_0 = arith.constant 0 : i32
    %c0_i32_1 = arith.constant 0 : i32
    return %c0_i32, %c0_i32_0 : i32, i32
  }
  func.func @transform_4(%arg0: i32) -> (i32, i32) {
    %c0_i32 = arith.constant 0 : i32
    %c0_i32_0 = arith.constant 0 : i32
    %c0_i32_1 = arith.constant 0 : i32
    return %c0_i32, %c0_i32_0 : i32, i32
  }
  func.func @transform_5(%arg0: i32) -> (i32, i32) {
    %c0_i32 = arith.constant 0 : i32
    %c0_i32_0 = arith.constant 0 : i32
    return %arg0, %c0_i32 : i32, i32
  }
}

</mosaic_0001>

<llo_original>
// kernel: tpu_custom_call.1
$region0: #{tpu_custom_call.1}
  #allocation0 [shape = 'u32[]', space=smem, size = 0x4, offset = 0x4, fixed_abs, tag = 'smem constant byte address 0x4 - core index']
  #allocation1 [shape = 'u32[72,128]{1,0:T(1,128)}', space=vmem, size = 0x9000, scoped, tag = 'internal scratch']
  %s0 = inlined_call_operand.vmem [shape: f32[64,32], index: 0, kind: input, shape index: {}]
  %s1 = inlined_call_operand.vmem [shape: f32[32,128], index: 1, kind: input, shape index: {}]
  %s2 = inlined_call_operand.vmem [shape: f32[8,128], index: 2, kind: input, shape index: {}]
  %s3 = inlined_call_operand.vmem [shape: f32[1,128], index: 3, kind: input, shape index: {}]
  %s4 = inlined_call_operand.vmem [shape: f32[1,128], index: 4, kind: input, shape index: {}]
  %s5 = inlined_call_operand.hbm [shape: f32[64,128], index: 5, kind: output, shape index: {}]
  %s6 = sld [smem:[#allocation0]]
  $region30: #{tpu_custom_call.1} parent=0
    _
  %s8 = ssub.s32 1, %s6
  %s9 = scalar_select 0, %s8, %s6
  $region1: #{tpu_custom_call.1} parent=0
    #allocation2 [shape = 'u8[32768]{0}', space=vmem, size = 0x8000, scoped, tag = 'output window, operand 0, single buffered']
    #allocation3 [shape = 's32[1]{0}', space=sflag, size = 0x4, scoped, tag = 'scoped memory for tpu_custom_call.1']
    %10 = vsyncpa [#allocation3], 0
    // Predicated region
    $region2: #{tpu_custom_call.1} parent=1 // pred_check
      _
    $region3: #{tpu_custom_call.1} parent=1 // pred_check_branch
      %12 = sbr.rel (0) target = $region5
    $region4: #{tpu_custom_call.1} parent=1 // pred_region
      _
    $region5: #{tpu_custom_call.1} parent=1 // pred_fallthru
      _
    // Predicated region
    $region6: #{tpu_custom_call.1} parent=1 // pred_check
      _
    $region7: #{tpu_custom_call.1} parent=1 // pred_check_branch
      %14 = sbr.rel (0) target = $region9
    $region8: #{tpu_custom_call.1} parent=1 // pred_region
      _
    $region9: #{tpu_custom_call.1} parent=1 // pred_fallthru
      _
    // Predicated region
    $region10: #{tpu_custom_call.1} parent=1 // pred_check
      _
    $region11: #{tpu_custom_call.1} parent=1 // pred_check_branch
      %16 = sbr.rel (0) target = $region13
    $region12: #{tpu_custom_call.1} parent=1 // pred_region
      _
    $region13: #{tpu_custom_call.1} parent=1 // pred_fallthru
      _
    // Predicated region
    $region14: #{tpu_custom_call.1} parent=1 // pred_check
      _
    $region15: #{tpu_custom_call.1} parent=1 // pred_check_branch
      %18 = sbr.rel (0) target = $region17
    $region16: #{tpu_custom_call.1} parent=1 // pred_region
      _
    $region17: #{tpu_custom_call.1} parent=1 // pred_fallthru
      _
    // Predicated region
    $region18: #{tpu_custom_call.1} parent=1 // pred_check
      _
    $region19: #{tpu_custom_call.1} parent=1 // pred_check_branch
      %20 = sbr.rel (0) target = $region21
    $region20: #{tpu_custom_call.1} parent=1 // pred_region
      _
    $region21: #{tpu_custom_call.1} parent=1 // pred_fallthru
      _
    %v21 = vld [vmem:[%s0] sm:$0xff]
    %v22 = vld [vmem:[%s0 + $0x8] sm:$0xff]
    %v23 = vld [vmem:[%s0 + $0x10] sm:$0xff]
    %v24 = vld [vmem:[%s0 + $0x18] sm:$0xff]
    %v25 = vld [vmem:[%s0 + $0x20] sm:$0xff]
    %v26 = vld [vmem:[%s0 + $0x28] sm:$0xff]
    %v27 = vld [vmem:[%s0 + $0x30] sm:$0xff]
    %v28 = vld [vmem:[%s0 + $0x38] sm:$0xff]
    %v29 = vld [vmem:[%s1] sm:$0xff]
    %v30 = vld [vmem:[%s1 + $0x8] sm:$0xff]
    %v31 = vld [vmem:[%s1 + $0x10] sm:$0xff]
    %v32 = vld [vmem:[%s1 + $0x18] sm:$0xff]
    %vm33 = vcmask 261120
    %v35 = vsel %vm33, %v21, 0
    %v38 = vsel %vm33, %v22, 0
    %v41 = vsel %vm33, %v23, 0
    %v44 = vsel %vm33, %v24, 0
    %v47 = vsel %vm33, %v25, 0
    %v50 = vsel %vm33, %v26, 0
    %v53 = vsel %vm33, %v27, 0
    %v56 = vsel %vm33, %v28, 0
    %58 = vmatpush.msra.mxu0 0.0
    %59 = vmatpush.msra.mxu0 0.0
    %60 = vmatpush.msra.mxu0 0.0
    %61 = vmatpush.msra.mxu0 0.0
    %62 = vmatpush.msra.mxu0 0.0
    %63 = vmatpush.msra.mxu0 0.0
    %64 = vmatpush.msra.mxu0 0.0
    %65 = vmatpush.msra.mxu0 0.0
    %66 = vmatpush.msra.mxu0 0.0
    %67 = vmatpush.msra.mxu0 0.0
    %68 = vmatpush.msra.mxu0 0.0
    %69 = vmatpush.msra.mxu0 0.0
    %70 = vmatpush.msra.mxu0 %v32
    %71 = vmatpush.msra.mxu0 %v31
    %72 = vmatpush.msra.mxu0 %v30
    %73 = vmatpush.msra.mxu0 %v29
    %74 = vmatmul.f32.gmra.mxu0 %v35
    %v75 = vpop.f32.mrf.mxu0
    %v76 = vadd.f32 0.0, %v75
    %77 = vmatmul.f32.gmra.mxu0 %v38
    %v78 = vpop.f32.mrf.mxu0
    %v79 = vadd.f32 0.0, %v78
    %80 = vmatmul.f32.gmra.mxu0 %v41
    %v81 = vpop.f32.mrf.mxu0
    %v82 = vadd.f32 0.0, %v81
    %83 = vmatmul.f32.gmra.mxu0 %v44
    %v84 = vpop.f32.mrf.mxu0
    %v85 = vadd.f32 0.0, %v84
    %86 = vmatmul.f32.gmra.mxu0 %v47
    %v87 = vpop.f32.mrf.mxu0
    %v88 = vadd.f32 0.0, %v87
    %89 = vmatmul.f32.gmra.mxu0 %v50
    %v90 = vpop.f32.mrf.mxu0
    %v91 = vadd.f32 0.0, %v90
    %92 = vmatmul.f32.gmra.mxu0 %v53
    %v93 = vpop.f32.mrf.mxu0
    %v94 = vadd.f32 0.0, %v93
    %95 = vmatmul.f32.gmra.mxu0 %v56
    %v96 = vpop.f32.mrf.mxu0
    %v97 = vadd.f32 0.0, %v96
    %98 = vdwg.mxu0
    %v99 = vmul.f32 %v21, %v21
    %v100 = vmul.f32 %v22, %v22
    %v101 = vmul.f32 %v23, %v23
    %v102 = vmul.f32 %v24, %v24
    %v103 = vmul.f32 %v25, %v25
    %v104 = vmul.f32 %v26, %v26
    %v105 = vmul.f32 %v27, %v27
    %v106 = vmul.f32 %v28, %v28
    %v107 = vsel %vm33, %v99, 0.0
    %v108 = vrot.slane %v107, 4
    %v109 = vadd.f32 %v107, %v108
    %v110 = vrot.slane %v109, 2
    %v111 = vadd.f32 %v109, %v110
    %v112 = vrot.slane %v111, 1
    %v113 = vadd.f32 %v111, %v112
    %v114 = vsel %vm33, %v100, 0.0
    %v115 = vrot.slane %v114, 4
    %v116 = vadd.f32 %v114, %v115
    %v117 = vrot.slane %v116, 2
    %v118 = vadd.f32 %v116, %v117
    %v119 = vrot.slane %v118, 1
    %v120 = vadd.f32 %v118, %v119
    %v121 = vsel %vm33, %v101, 0.0
    %v122 = vrot.slane %v121, 4
    %v123 = vadd.f32 %v121, %v122
    %v124 = vrot.slane %v123, 2
    %v125 = vadd.f32 %v123, %v124
    %v126 = vrot.slane %v125, 1
    %v127 = vadd.f32 %v125, %v126
    %v128 = vsel %vm33, %v102, 0.0
    %v129 = vrot.slane %v128, 4
    %v130 = vadd.f32 %v128, %v129
    %v131 = vrot.slane %v130, 2
    %v132 = vadd.f32 %v130, %v131
    %v133 = vrot.slane %v132, 1
    %v134 = vadd.f32 %v132, %v133
    %v135 = vsel %vm33, %v103, 0.0
    %v136 = vrot.slane %v135, 4
    %v137 = vadd.f32 %v135, %v136
    %v138 = vrot.slane %v137, 2
    %v139 = vadd.f32 %v137, %v138
    %v140 = vrot.slane %v139, 1
    %v141 = vadd.f32 %v139, %v140
    %v142 = vsel %vm33, %v104, 0.0
    %v143 = vrot.slane %v142, 4
    %v144 = vadd.f32 %v142, %v143
    %v145 = vrot.slane %v144, 2
    %v146 = vadd.f32 %v144, %v145
    %v147 = vrot.slane %v146, 1
    %v148 = vadd.f32 %v146, %v147
    %v149 = vsel %vm33, %v105, 0.0
    %v150 = vrot.slane %v149, 4
    %v151 = vadd.f32 %v149, %v150
    %v152 = vrot.slane %v151, 2
    %v153 = vadd.f32 %v151, %v152
    %v154 = vrot.slane %v153, 1
    %v155 = vadd.f32 %v153, %v154
    %v156 = vsel %vm33, %v106, 0.0
    %v157 = vrot.slane %v156, 4
    %v158 = vadd.f32 %v156, %v157
    %v159 = vrot.slane %v158, 2
    %v160 = vadd.f32 %v158, %v159
    %v161 = vrot.slane %v160, 1
    %v162 = vadd.f32 %v160, %v161
    %v163 = vrsqrt.pop %v113
    %v164 = vmul.f32 %v163, %v113
    %v165 = vmul.f32 %v164, %v163
    %v166 = vmul.f32 0.5, %v165
    %v167 = vsub.f32 1.5, %v166
    %v168 = vmul.f32 %v163, %v167
    %v169 = vmul.f32 %v113, %v168
    %vm170 = vcmp.eq.f32.partialorder %v113, inf
    %v171 = vsel %vm170, %v113, %v169
    %vm172 = vcmp.eq.f32.partialorder %v113, 0.0
    %v173 = vand.u32 %v113, 2147483648
    %v174 = vsel %vm172, %v173, %v171
    %v175 = vrsqrt.pop %v120
    %v176 = vmul.f32 %v175, %v120
    %v177 = vmul.f32 %v176, %v175
    %v178 = vmul.f32 0.5, %v177
    %v179 = vsub.f32 1.5, %v178
    %v180 = vmul.f32 %v175, %v179
    %v181 = vmul.f32 %v120, %v180
    %vm182 = vcmp.eq.f32.partialorder %v120, inf
    %v183 = vsel %vm182, %v120, %v181
    %vm184 = vcmp.eq.f32.partialorder %v120, 0.0
    %v185 = vand.u32 %v120, 2147483648
    %v186 = vsel %vm184, %v185, %v183
    %v187 = vrsqrt.pop %v127
    %v188 = vmul.f32 %v187, %v127
    %v189 = vmul.f32 %v188, %v187
    %v190 = vmul.f32 0.5, %v189
    %v191 = vsub.f32 1.5, %v190
    %v192 = vmul.f32 %v187, %v191
    %v193 = vmul.f32 %v127, %v192
    %vm194 = vcmp.eq.f32.partialorder %v127, inf
    %v195 = vsel %vm194, %v127, %v193
    %vm196 = vcmp.eq.f32.partialorder %v127, 0.0
    %v197 = vand.u32 %v127, 2147483648
    %v198 = vsel %vm196, %v197, %v195
    %v199 = vrsqrt.pop %v134
    %v200 = vmul.f32 %v199, %v134
    %v201 = vmul.f32 %v200, %v199
    %v202 = vmul.f32 0.5, %v201
    %v203 = vsub.f32 1.5, %v202
    %v204 = vmul.f32 %v199, %v203
    %v205 = vmul.f32 %v134, %v204
    %vm206 = vcmp.eq.f32.partialorder %v134, inf
    %v207 = vsel %vm206, %v134, %v205
    %vm208 = vcmp.eq.f32.partialorder %v134, 0.0
    %v209 = vand.u32 %v134, 2147483648
    %v210 = vsel %vm208, %v209, %v207
    %v211 = vrsqrt.pop %v141
    %v212 = vmul.f32 %v211, %v141
    %v213 = vmul.f32 %v212, %v211
    %v214 = vmul.f32 0.5, %v213
    %v215 = vsub.f32 1.5, %v214
    %v216 = vmul.f32 %v211, %v215
    %v217 = vmul.f32 %v141, %v216
    %vm218 = vcmp.eq.f32.partialorder %v141, inf
    %v219 = vsel %vm218, %v141, %v217
    %vm220 = vcmp.eq.f32.partialorder %v141, 0.0
    %v221 = vand.u32 %v141, 2147483648
    %v222 = vsel %vm220, %v221, %v219
    %v223 = vrsqrt.pop %v148
    %v224 = vmul.f32 %v223, %v148
    %v225 = vmul.f32 %v224, %v223
    %v226 = vmul.f32 0.5, %v225
    %v227 = vsub.f32 1.5, %v226
    %v228 = vmul.f32 %v223, %v227
    %v229 = vmul.f32 %v148, %v228
    %vm230 = vcmp.eq.f32.partialorder %v148, inf
    %v231 = vsel %vm230, %v148, %v229
    %vm232 = vcmp.eq.f32.partialorder %v148, 0.0
    %v233 = vand.u32 %v148, 2147483648
    %v234 = vsel %vm232, %v233, %v231
    %v235 = vrsqrt.pop %v155
    %v236 = vmul.f32 %v235, %v155
    %v237 = vmul.f32 %v236, %v235
    %v238 = vmul.f32 0.5, %v237
    %v239 = vsub.f32 1.5, %v238
    %v240 = vmul.f32 %v235, %v239
    %v241 = vmul.f32 %v155, %v240
    %vm242 = vcmp.eq.f32.partialorder %v155, inf
    %v243 = vsel %vm242, %v155, %v241
    %vm244 = vcmp.eq.f32.partialorder %v155, 0.0
    %v245 = vand.u32 %v155, 2147483648
    %v246 = vsel %vm244, %v245, %v243
    %v247 = vrsqrt.pop %v162
    %v248 = vmul.f32 %v247, %v162
    %v249 = vmul.f32 %v248, %v247
    %v250 = vmul.f32 0.5, %v249
    %v251 = vsub.f32 1.5, %v250
    %v252 = vmul.f32 %v247, %v251
    %v253 = vmul.f32 %v162, %v252
    %vm254 = vcmp.eq.f32.partialorder %v162, inf
    %v255 = vsel %vm254, %v162, %v253
    %vm256 = vcmp.eq.f32.partialorder %v162, 0.0
    %v257 = vand.u32 %v162, 2147483648
    %v258 = vsel %vm256, %v257, %v255
    %vm267 = vcmask 1041409
    %v268 = vsel %vm267, %v186, %v174
    %vm269 = vcmask 1042434
    %v270 = vsel %vm269, %v198, %v268
    %vm271 = vcmask 1043459
    %v272 = vsel %vm271, %v210, %v270
    %vm273 = vcmask 1044484
    %v274 = vsel %vm273, %v222, %v272
    %vm275 = vcmask 1045509
    %v276 = vsel %vm275, %v234, %v274
    %vm277 = vcmask 1046534
    %v278 = vsel %vm277, %v246, %v276
    %vm279 = vcmask 1047559
    %v280 = vsel %vm279, %v258, %v278
    %v281 = vsel %vm33, %v280, 0
    %283 = vmatpush.msra.mxu0 0.0
    %284 = vmatpush.msra.mxu0 0.0
    %285 = vmatpush.msra.mxu0 0.0
    %286 = vmatpush.msra.mxu0 0.0
    %287 = vmatpush.msra.mxu0 0.0
    %288 = vmatpush.msra.mxu0 0.0
    %289 = vmatpush.msra.mxu0 0.0
    %290 = vmatpush.msra.mxu0 0.0
    %291 = vmatpush.msra.mxu0 0.0
    %292 = vmatpush.msra.mxu0 0.0
    %293 = vmatpush.msra.mxu0 0.0
    %294 = vmatpush.msra.mxu0 0.0
    %295 = vmatpush.msra.mxu0 %v32
    %296 = vmatpush.msra.mxu0 %v31
    %297 = vmatpush.msra.mxu0 %v30
    %298 = vmatpush.msra.mxu0 %v29
    %299 = vmatmul.f32.gmra.mxu0 %v281
    %v300 = vpop.f32.mrf.mxu0
    %v301 = vadd.f32 0.0, %v300
    %302 = vdwg.mxu0
    %v303 = vld [vmem:[%s2] sm:$0xff]
    %v304 = vadd.f32 %v76, %v303
    %v305 = vadd.f32 %v79, %v303
    %v306 = vadd.f32 %v82, %v303
    %v307 = vadd.f32 %v85, %v303
    %v308 = vadd.f32 %v88, %v303
    %v309 = vadd.f32 %v91, %v303
    %v310 = vadd.f32 %v94, %v303
    %v311 = vadd.f32 %v97, %v303
    %v312 = vmul.f32 %v76, %v76
    %v313 = vmul.f32 %v79, %v79
    %v314 = vmul.f32 %v82, %v82
    %v315 = vmul.f32 %v85, %v85
    %v316 = vmul.f32 %v88, %v88
    %v317 = vmul.f32 %v91, %v91
    %v318 = vmul.f32 %v94, %v94
    %v319 = vmul.f32 %v97, %v97
    %v320 = vrot.slane %v312, 4
    %v321 = vadd.f32 %v312, %v320
    %v322 = vrot.slane %v321, 2
    %v323 = vadd.f32 %v321, %v322
    %v324 = vrot.slane %v323, 1
    %v325 = vadd.f32 %v323, %v324
    %v326 = vrot.slane %v313, 4
    %v327 = vadd.f32 %v313, %v326
    %v328 = vrot.slane %v327, 2
    %v329 = vadd.f32 %v327, %v328
    %v330 = vrot.slane %v329, 1
    %v331 = vadd.f32 %v329, %v330
    %v332 = vrot.slane %v314, 4
    %v333 = vadd.f32 %v314, %v332
    %v334 = vrot.slane %v333, 2
    %v335 = vadd.f32 %v333, %v334
    %v336 = vrot.slane %v335, 1
    %v337 = vadd.f32 %v335, %v336
    %v338 = vrot.slane %v315, 4
    %v339 = vadd.f32 %v315, %v338
    %v340 = vrot.slane %v339, 2
    %v341 = vadd.f32 %v339, %v340
    %v342 = vrot.slane %v341, 1
    %v343 = vadd.f32 %v341, %v342
    %v344 = vrot.slane %v316, 4
    %v345 = vadd.f32 %v316, %v344
    %v346 = vrot.slane %v345, 2
    %v347 = vadd.f32 %v345, %v346
    %v348 = vrot.slane %v347, 1
    %v349 = vadd.f32 %v347, %v348
    %v350 = vrot.slane %v317, 4
    %v351 = vadd.f32 %v317, %v350
    %v352 = vrot.slane %v351, 2
    %v353 = vadd.f32 %v351, %v352
    %v354 = vrot.slane %v353, 1
    %v355 = vadd.f32 %v353, %v354
    %v356 = vrot.slane %v318, 4
    %v357 = vadd.f32 %v318, %v356
    %v358 = vrot.slane %v357, 2
    %v359 = vadd.f32 %v357, %v358
    %v360 = vrot.slane %v359, 1
    %v361 = vadd.f32 %v359, %v360
    %v362 = vrot.slane %v319, 4
    %v363 = vadd.f32 %v319, %v362
    %v364 = vrot.slane %v363, 2
    %v365 = vadd.f32 %v363, %v364
    %v366 = vrot.slane %v365, 1
    %v367 = vadd.f32 %v365, %v366
    %v368 = vrsqrt.pop %v325
    %v369 = vmul.f32 %v368, %v325
    %v370 = vmul.f32 %v369, %v368
    %v371 = vmul.f32 0.5, %v370
    %v372 = vsub.f32 1.5, %v371
    %v373 = vmul.f32 %v368, %v372
    %v374 = vmul.f32 %v325, %v373
    %vm375 = vcmp.eq.f32.partialorder %v325, inf
    %v376 = vsel %vm375, %v325, %v374
    %vm377 = vcmp.eq.f32.partialorder %v325, 0.0
    %v378 = vand.u32 %v325, 2147483648
    %v379 = vsel %vm377, %v378, %v376
    %v380 = vrsqrt.pop %v331
    %v381 = vmul.f32 %v380, %v331
    %v382 = vmul.f32 %v381, %v380
    %v383 = vmul.f32 0.5, %v382
    %v384 = vsub.f32 1.5, %v383
    %v385 = vmul.f32 %v380, %v384
    %v386 = vmul.f32 %v331, %v385
    %vm387 = vcmp.eq.f32.partialorder %v331, inf
    %v388 = vsel %vm387, %v331, %v386
    %vm389 = vcmp.eq.f32.partialorder %v331, 0.0
    %v390 = vand.u32 %v331, 2147483648
    %v391 = vsel %vm389, %v390, %v388
    %v392 = vrsqrt.pop %v337
    %v393 = vmul.f32 %v392, %v337
    %v394 = vmul.f32 %v393, %v392
    %v395 = vmul.f32 0.5, %v394
    %v396 = vsub.f32 1.5, %v395
    %v397 = vmul.f32 %v392, %v396
    %v398 = vmul.f32 %v337, %v397
    %vm399 = vcmp.eq.f32.partialorder %v337, inf
    %v400 = vsel %vm399, %v337, %v398
    %vm401 = vcmp.eq.f32.partialorder %v337, 0.0
    %v402 = vand.u32 %v337, 2147483648
    %v403 = vsel %vm401, %v402, %v400
    %v404 = vrsqrt.pop %v343
    %v405 = vmul.f32 %v404, %v343
    %v406 = vmul.f32 %v405, %v404
    %v407 = vmul.f32 0.5, %v406
    %v408 = vsub.f32 1.5, %v407
    %v409 = vmul.f32 %v404, %v408
    %v410 = vmul.f32 %v343, %v409
    %vm411 = vcmp.eq.f32.partialorder %v343, inf
    %v412 = vsel %vm411, %v343, %v410
    %vm413 = vcmp.eq.f32.partialorder %v343, 0.0
    %v414 = vand.u32 %v343, 2147483648
    %v415 = vsel %vm413, %v414, %v412
    %v416 = vrsqrt.pop %v349
    %v417 = vmul.f32 %v416, %v349
    %v418 = vmul.f32 %v417, %v416
    %v419 = vmul.f32 0.5, %v418
    %v420 = vsub.f32 1.5, %v419
    %v421 = vmul.f32 %v416, %v420
    %v422 = vmul.f32 %v349, %v421
    %vm423 = vcmp.eq.f32.partialorder %v349, inf
    %v424 = vsel %vm423, %v349, %v422
    %vm425 = vcmp.eq.f32.partialorder %v349, 0.0
    %v426 = vand.u32 %v349, 2147483648
    %v427 = vsel %vm425, %v426, %v424
    %v428 = vrsqrt.pop %v355
    %v429 = vmul.f32 %v428, %v355
    %v430 = vmul.f32 %v429, %v428
    %v431 = vmul.f32 0.5, %v430
    %v432 = vsub.f32 1.5, %v431
    %v433 = vmul.f32 %v428, %v432
    %v434 = vmul.f32 %v355, %v433
    %vm435 = vcmp.eq.f32.partialorder %v355, inf
    %v436 = vsel %vm435, %v355, %v434
    %vm437 = vcmp.eq.f32.partialorder %v355, 0.0
    %v438 = vand.u32 %v355, 2147483648
    %v439 = vsel %vm437, %v438, %v436
    %v440 = vrsqrt.pop %v361
    %v441 = vmul.f32 %v440, %v361
    %v442 = vmul.f32 %v441, %v440
    %v443 = vmul.f32 0.5, %v442
    %v444 = vsub.f32 1.5, %v443
    %v445 = vmul.f32 %v440, %v444
    %v446 = vmul.f32 %v361, %v445
    %vm447 = vcmp.eq.f32.partialorder %v361, inf
    %v448 = vsel %vm447, %v361, %v446
    %vm449 = vcmp.eq.f32.partialorder %v361, 0.0
    %v450 = vand.u32 %v361, 2147483648
    %v451 = vsel %vm449, %v450, %v448
    %v452 = vrsqrt.pop %v367
    %v453 = vmul.f32 %v452, %v367
    %v454 = vmul.f32 %v453, %v452
    %v455 = vmul.f32 0.5, %v454
    %v456 = vsub.f32 1.5, %v455
    %v457 = vmul.f32 %v452, %v456
    %v458 = vmul.f32 %v367, %v457
    %vm459 = vcmp.eq.f32.partialorder %v367, inf
    %v460 = vsel %vm459, %v367, %v458
    %vm461 = vcmp.eq.f32.partialorder %v367, 0.0
    %v462 = vand.u32 %v367, 2147483648
    %v463 = vsel %vm461, %v462, %v460
    %v464 = vmul.f32 %v379, 0.5
    %v465 = vmul.f32 %v391, 0.5
    %v466 = vmul.f32 %v403, 0.5
    %v467 = vmul.f32 %v415, 0.5
    %v468 = vmul.f32 %v427, 0.5
    %v469 = vmul.f32 %v439, 0.5
    %v470 = vmul.f32 %v451, 0.5
    %v471 = vmul.f32 %v463, 0.5
    %v472 = vmul.f32 %v301, 0.5
    %v474 = vrot.slane %v472, 1
    %v475 = vrot.slane %v472, 2
    %v476 = vrot.slane %v472, 3
    %v477 = vrot.slane %v472, 4
    %v478 = vrot.slane %v472, 5
    %v479 = vrot.slane %v472, 6
    %v480 = vrot.slane %v472, 7
    %v489 = vadd.f32 %v464, %v472
    %v490 = vadd.f32 %v465, %v474
    %v491 = vadd.f32 %v466, %v475
    %v492 = vadd.f32 %v467, %v476
    %v493 = vadd.f32 %v468, %v477
    %v494 = vadd.f32 %v469, %v478
    %v495 = vadd.f32 %v470, %v479
    %v496 = vadd.f32 %v471, %v480
    %v505 = vrot.slane %v490, 7
    %v506 = vsel %vm267, %v505, %v489
    %v507 = vrot.slane %v491, 6
    %v508 = vsel %vm269, %v507, %v506
    %v509 = vrot.slane %v492, 5
    %v510 = vsel %vm271, %v509, %v508
    %v511 = vrot.slane %v493, 4
    %v512 = vsel %vm273, %v511, %v510
    %v513 = vrot.slane %v494, 3
    %v514 = vsel %vm275, %v513, %v512
    %v515 = vrot.slane %v495, 2
    %v516 = vsel %vm277, %v515, %v514
    %v517 = vrot.slane %v496, 1
    %v518 = vsel %vm279, %v517, %v516
    %520 = vadd.xlane.f32.xlu0 %v518
    %v521 = vpop.xlane.xlu0 %520
    %v522 = vrcp.pop 128.0
    %v523 = vmul.f32 128.0, %v522
    %v524 = vsub.f32 1.0, %v523
    %v525 = vmul.f32 %v522, %v524
    %v526 = vadd.f32 %v522, %v525
    %vm527 = vweird.f32 %v522
    %v528 = vsel %vm527, %v522, %v526
    %v529 = vmul.f32 %v521, %v528
    %v531 = vrot.slane %v529, 1
    %v532 = vrot.slane %v529, 2
    %v533 = vrot.slane %v529, 3
    %v534 = vrot.slane %v529, 4
    %v535 = vrot.slane %v529, 5
    %v536 = vrot.slane %v529, 6
    %v537 = vrot.slane %v529, 7
    %v546 = vsub.f32 %v489, %v529
    %v547 = vsub.f32 %v490, %v531
    %v548 = vsub.f32 %v491, %v532
    %v549 = vsub.f32 %v492, %v533
    %v550 = vsub.f32 %v493, %v534
    %v551 = vsub.f32 %v494, %v535
    %v552 = vsub.f32 %v495, %v536
    %v553 = vsub.f32 %v496, %v537
    %v554 = vmul.f32 %v546, %v546
    %v555 = vmul.f32 %v547, %v547
    %v556 = vmul.f32 %v548, %v548
    %v557 = vmul.f32 %v549, %v549
    %v558 = vmul.f32 %v550, %v550
    %v559 = vmul.f32 %v551, %v551
    %v560 = vmul.f32 %v552, %v552
    %v561 = vmul.f32 %v553, %v553
    %v570 = vrot.slane %v555, 7
    %v571 = vsel %vm267, %v570, %v554
    %v572 = vrot.slane %v556, 6
    %v573 = vsel %vm269, %v572, %v571
    %v574 = vrot.slane %v557, 5
    %v575 = vsel %vm271, %v574, %v573
    %v576 = vrot.slane %v558, 4
    %v577 = vsel %vm273, %v576, %v575
    %v578 = vrot.slane %v559, 3
    %v579 = vsel %vm275, %v578, %v577
    %v580 = vrot.slane %v560, 2
    %v581 = vsel %vm277, %v580, %v579
    %v582 = vrot.slane %v561, 1
    %v583 = vsel %vm279, %v582, %v581
    %585 = vadd.xlane.f32.xlu0 %v583
    %v586 = vpop.xlane.xlu0 %585
    %v587 = vmul.f32 %v586, %v528
    %v588 = vadd.f32 %v587, 1e-05
    %v589 = vrsqrt.pop %v588
    %v590 = vmul.f32 %v589, %v588
    %v591 = vmul.f32 %v590, %v589
    %v592 = vmul.f32 0.5, %v591
    %v593 = vsub.f32 1.5, %v592
    %v594 = vmul.f32 %v589, %v593
    %vm595 = vweird.f32 %v588
    %vm596 = vweird.f32 %v589
    %vm597 = vmor %vm595, %vm596
    %v598 = vsel %vm597, %v589, %v594
    %v600 = vrot.slane %v598, 1
    %v601 = vrot.slane %v598, 2
    %v602 = vrot.slane %v598, 3
    %v603 = vrot.slane %v598, 4
    %v604 = vrot.slane %v598, 5
    %v605 = vrot.slane %v598, 6
    %v606 = vrot.slane %v598, 7
    %v615 = vmul.f32 %v546, %v598
    %v616 = vmul.f32 %v547, %v600
    %v617 = vmul.f32 %v548, %v601
    %v618 = vmul.f32 %v549, %v602
    %v619 = vmul.f32 %v550, %v603
    %v620 = vmul.f32 %v551, %v604
    %v621 = vmul.f32 %v552, %v605
    %v622 = vmul.f32 %v553, %v606
    %v623 = vld [vmem:[%s3] sm:$0x1]
    %v625 = vperm.slane %v623, 0
    %v627 = vmul.f32 %v615, %v625
    %v628 = vmul.f32 %v616, %v625
    %v629 = vmul.f32 %v617, %v625
    %v630 = vmul.f32 %v618, %v625
    %v631 = vmul.f32 %v619, %v625
    %v632 = vmul.f32 %v620, %v625
    %v633 = vmul.f32 %v621, %v625
    %v634 = vmul.f32 %v622, %v625
    %v635 = vld [vmem:[%s4] sm:$0x1]
    %v637 = vperm.slane %v635, 0
    %v639 = vadd.f32 %v627, %v637
    %v640 = vadd.f32 %v628, %v637
    %v641 = vadd.f32 %v629, %v637
    %v642 = vadd.f32 %v630, %v637
    %v643 = vadd.f32 %v631, %v637
    %v644 = vadd.f32 %v632, %v637
    %v645 = vadd.f32 %v633, %v637
    %v646 = vadd.f32 %v634, %v637
    %v647 = vmax.f32 %v639, 0.0
    %v648 = vmax.f32 %v640, 0.0
    %v649 = vmax.f32 %v641, 0.0
    %v650 = vmax.f32 %v642, 0.0
    %v651 = vmax.f32 %v643, 0.0
    %v652 = vmax.f32 %v644, 0.0
    %v653 = vmax.f32 %v645, 0.0
    %v654 = vmax.f32 %v646, 0.0
    %v655 = vmul.f32 %v304, %v304
    %v656 = vmul.f32 %v305, %v305
    %v657 = vmul.f32 %v306, %v306
    %v658 = vmul.f32 %v307, %v307
    %v659 = vmul.f32 %v308, %v308
    %v660 = vmul.f32 %v309, %v309
    %v661 = vmul.f32 %v310, %v310
    %v662 = vmul.f32 %v311, %v311
    %v663 = vrot.slane %v655, 4
    %v664 = vadd.f32 %v655, %v663
    %v665 = vrot.slane %v664, 2
    %v666 = vadd.f32 %v664, %v665
    %v667 = vrot.slane %v666, 1
    %v668 = vadd.f32 %v666, %v667
    %v669 = vrot.slane %v656, 4
    %v670 = vadd.f32 %v656, %v669
    %v671 = vrot.slane %v670, 2
    %v672 = vadd.f32 %v670, %v671
    %v673 = vrot.slane %v672, 1
    %v674 = vadd.f32 %v672, %v673
    %v675 = vrot.slane %v657, 4
    %v676 = vadd.f32 %v657, %v675
    %v677 = vrot.slane %v676, 2
    %v678 = vadd.f32 %v676, %v677
    %v679 = vrot.slane %v678, 1
    %v680 = vadd.f32 %v678, %v679
    %v681 = vrot.slane %v658, 4
    %v682 = vadd.f32 %v658, %v681
    %v683 = vrot.slane %v682, 2
    %v684 = vadd.f32 %v682, %v683
    %v685 = vrot.slane %v684, 1
    %v686 = vadd.f32 %v684, %v685
    %v687 = vrot.slane %v659, 4
    %v688 = vadd.f32 %v659, %v687
    %v689 = vrot.slane %v688, 2
    %v690 = vadd.f32 %v688, %v689
    %v691 = vrot.slane %v690, 1
    %v692 = vadd.f32 %v690, %v691
    %v693 = vrot.slane %v660, 4
    %v694 = vadd.f32 %v660, %v693
    %v695 = vrot.slane %v694, 2
    %v696 = vadd.f32 %v694, %v695
    %v697 = vrot.slane %v696, 1
    %v698 = vadd.f32 %v696, %v697
    %v699 = vrot.slane %v661, 4
    %v700 = vadd.f32 %v661, %v699
    %v701 = vrot.slane %v700, 2
    %v702 = vadd.f32 %v700, %v701
    %v703 = vrot.slane %v702, 1
    %v704 = vadd.f32 %v702, %v703
    %v705 = vrot.slane %v662, 4
    %v706 = vadd.f32 %v662, %v705
    %v707 = vrot.slane %v706, 2
    %v708 = vadd.f32 %v706, %v707
    %v709 = vrot.slane %v708, 1
    %v710 = vadd.f32 %v708, %v709
    %v711 = vadd.f32 %v668, 1e-16
    %v712 = vadd.f32 %v674, 1e-16
    %v713 = vadd.f32 %v680, 1e-16
    %v714 = vadd.f32 %v686, 1e-16
    %v715 = vadd.f32 %v692, 1e-16
    %v716 = vadd.f32 %v698, 1e-16
    %v717 = vadd.f32 %v704, 1e-16
    %v718 = vadd.f32 %v710, 1e-16
    %v719 = vrsqrt.pop %v711
    %v720 = vmul.f32 %v719, %v711
    %v721 = vmul.f32 %v720, %v719
    %v722 = vmul.f32 0.5, %v721
    %v723 = vsub.f32 1.5, %v722
    %v724 = vmul.f32 %v719, %v723
    %vm725 = vweird.f32 %v711
    %vm726 = vweird.f32 %v719
    %vm727 = vmor %vm725, %vm726
    %v728 = vsel %vm727, %v719, %v724
    %v729 = vrsqrt.pop %v712
    %v730 = vmul.f32 %v729, %v712
    %v731 = vmul.f32 %v730, %v729
    %v732 = vmul.f32 0.5, %v731
    %v733 = vsub.f32 1.5, %v732
    %v734 = vmul.f32 %v729, %v733
    %vm735 = vweird.f32 %v712
    %vm736 = vweird.f32 %v729
    %vm737 = vmor %vm735, %vm736
    %v738 = vsel %vm737, %v729, %v734
    %v739 = vrsqrt.pop %v713
    %v740 = vmul.f32 %v739, %v713
    %v741 = vmul.f32 %v740, %v739
    %v742 = vmul.f32 0.5, %v741
    %v743 = vsub.f32 1.5, %v742
    %v744 = vmul.f32 %v739, %v743
    %vm745 = vweird.f32 %v713
    %vm746 = vweird.f32 %v739
    %vm747 = vmor %vm745, %vm746
    %v748 = vsel %vm747, %v739, %v744
    %v749 = vrsqrt.pop %v714
    %v750 = vmul.f32 %v749, %v714
    %v751 = vmul.f32 %v750, %v749
    %v752 = vmul.f32 0.5, %v751
    %v753 = vsub.f32 1.5, %v752
    %v754 = vmul.f32 %v749, %v753
    %vm755 = vweird.f32 %v714
    %vm756 = vweird.f32 %v749
    %vm757 = vmor %vm755, %vm756
    %v758 = vsel %vm757, %v749, %v754
    %v759 = vrsqrt.pop %v715
    %v760 = vmul.f32 %v759, %v715
    %v761 = vmul.f32 %v760, %v759
    %v762 = vmul.f32 0.5, %v761
    %v763 = vsub.f32 1.5, %v762
    %v764 = vmul.f32 %v759, %v763
    %vm765 = vweird.f32 %v715
    %vm766 = vweird.f32 %v759
    %vm767 = vmor %vm765, %vm766
    %v768 = vsel %vm767, %v759, %v764
    %v769 = vrsqrt.pop %v716
    %v770 = vmul.f32 %v769, %v716
    %v771 = vmul.f32 %v770, %v769
    %v772 = vmul.f32 0.5, %v771
    %v773 = vsub.f32 1.5, %v772
    %v774 = vmul.f32 %v769, %v773
    %vm775 = vweird.f32 %v716
    %vm776 = vweird.f32 %v769
    %vm777 = vmor %vm775, %vm776
    %v778 = vsel %vm777, %v769, %v774
    %v779 = vrsqrt.pop %v717
    %v780 = vmul.f32 %v779, %v717
    %v781 = vmul.f32 %v780, %v779
    %v782 = vmul.f32 0.5, %v781
    %v783 = vsub.f32 1.5, %v782
    %v784 = vmul.f32 %v779, %v783
    %vm785 = vweird.f32 %v717
    %vm786 = vweird.f32 %v779
    %vm787 = vmor %vm785, %vm786
    %v788 = vsel %vm787, %v779, %v784
    %v789 = vrsqrt.pop %v718
    %v790 = vmul.f32 %v789, %v718
    %v791 = vmul.f32 %v790, %v789
    %v792 = vmul.f32 0.5, %v791
    %v793 = vsub.f32 1.5, %v792
    %v794 = vmul.f32 %v789, %v793
    %vm795 = vweird.f32 %v718
    %vm796 = vweird.f32 %v789
    %vm797 = vmor %vm795, %vm796
    %v798 = vsel %vm797, %v789, %v794
    %v799 = vmul.f32 %v647, %v728
    %v800 = vmul.f32 %v648, %v738
    %v801 = vmul.f32 %v649, %v748
    %v802 = vmul.f32 %v650, %v758
    %v803 = vmul.f32 %v651, %v768
    %v804 = vmul.f32 %v652, %v778
    %v805 = vmul.f32 %v653, %v788
    %v806 = vmul.f32 %v654, %v798
    %v807 = vperm.slane %v799, 0
    %v808 = vperm.slane %v800, 0
    %v809 = vperm.slane %v801, 0
    %v810 = vperm.slane %v802, 0
    %v811 = vperm.slane %v803, 0
    %v812 = vperm.slane %v804, 0
    %v813 = vperm.slane %v805, 0
    %v814 = vperm.slane %v806, 0
    %v815 = vmul.f32 %v304, %v807
    %v816 = vmul.f32 %v305, %v808
    %v817 = vmul.f32 %v306, %v809
    %v818 = vmul.f32 %v307, %v810
    %v819 = vmul.f32 %v308, %v811
    %v820 = vmul.f32 %v309, %v812
    %v821 = vmul.f32 %v310, %v813
    %v822 = vmul.f32 %v311, %v814
    %823 = vst [vmem:[#allocation2] sm:$0xff] %v815
    %824 = vst [vmem:[#allocation2 + $0x8] sm:$0xff] %v816
    %825 = vst [vmem:[#allocation2 + $0x10] sm:$0xff] %v817
    %826 = vst [vmem:[#allocation2 + $0x18] sm:$0xff] %v818
    %827 = vst [vmem:[#allocation2 + $0x20] sm:$0xff] %v819
    %828 = vst [vmem:[#allocation2 + $0x28] sm:$0xff] %v820
    %829 = vst [vmem:[#allocation2 + $0x30] sm:$0xff] %v821
    %830 = vst [vmem:[#allocation2 + $0x38] sm:$0xff] %v822
    // Predicated region
    $region22: #{tpu_custom_call.1} parent=1 // pred_check
      _
    $region23: #{tpu_custom_call.1} parent=1 // pred_check_branch
      %832 = sbr.rel (0) target = $region25
    $region24: #{tpu_custom_call.1} parent=1 // pred_region
      %834 = vsyncadd [#allocation3], 0
      %s835 = sshll.u32 [#allocation2], 4
      %s836 = int_to_ptr.vmem [resolvable:$true] %s835
      %s837 = sshll.u32 %s5, 4
      %s838 = int_to_ptr.hbm [resolvable:$true] %s837
      %843 = dma.vmem_to_hbm [thread:$0]  %s836, 1024, %s838, [#allocation3], 128, 128, 8
    $region25: #{tpu_custom_call.1} parent=1 // pred_fallthru
      _
    // Predicated region
    $region26: #{tpu_custom_call.1} parent=1 // pred_check
      _
    $region27: #{tpu_custom_call.1} parent=1 // pred_check_branch
      %845 = sbr.rel (0) target = $region29
    $region28: #{tpu_custom_call.1} parent=1 // pred_region
      %847 = dma.done [#allocation3], 1024
    $region29: #{tpu_custom_call.1} parent=1 // pred_fallthru
      _
    %848 = vsyncpa [#allocation3], 1

</llo_original>
